<compile_context>
chip_gen: v7x
topology: tpu7x:2x2x1
jax: 0.10.0
libtpu: 0.0.40
codegen_flags: <defaults>
</compile_context>

<pallas_src>
import jax
import jax.numpy as jnp
from jax.experimental import pallas as pl
from jax.experimental.pallas import tpu as pltpu


_IN, _H1, _H2, _OUT = 784, 256, 128, 10
_OUT_PAD = 128  # pad the final output width to a full 128-lane so stores are lane-dense


def _round_up(x, m):
    return (x + m - 1) // m * m


def _mlp_kernel(x_ref, w1_ref, b1_ref, w2_ref, b2_ref, w3_ref, b3_ref, o_ref):
    """Fully fused 3-layer MLP for one (tm, 784) batch tile.

    All weights are resident VMEM blocks; intermediate activations stay in
    vregs/VMEM — no HBM traffic between layers and no accumulator scratch.
    """
    h = jnp.dot(x_ref[...], w1_ref[...], preferred_element_type=jnp.float32)
    h = jnp.maximum(h + b1_ref[...], 0.0)
    h = jnp.dot(h, w2_ref[...], preferred_element_type=jnp.float32)
    h = jnp.maximum(h + b2_ref[...], 0.0)
    h = jnp.dot(h, w3_ref[...], preferred_element_type=jnp.float32)
    o_ref[...] = (h + b3_ref[...]).astype(o_ref.dtype)


def init_params(key):
    """Deterministic nn.Linear-style init (Kaiming-ish uniform).

    Weights returned in (in_features, out_features) layout, biases (out,).
    """
    dims = [(_IN, _H1), (_H1, _H2), (_H2, _OUT)]
    params = []
    for i, (fin, fout) in enumerate(dims):
        kw, kb = jax.random.split(jax.random.fold_in(key, i))
        bound = 1.0 / jnp.sqrt(fin)
        w = jax.random.uniform(kw, (fin, fout), jnp.float32, -bound, bound)
        b = jax.random.uniform(kb, (fout,), jnp.float32, -bound, bound)
        params.append((w, b))
    return params


def pad_params(params):
    """One-time packing done OUTSIDE the per-forward jit.

    Only the last layer needs padding (out-features 10 -> 128); biases become
    (1, N) rows so the in-kernel broadcast is a plain 2-D add. Zero padding is
    exact: the extra output columns are identically zero and sliced off.
    """
    (w1, b1), (w2, b2), (w3, b3) = params
    w3_p = jnp.zeros((_H2, _OUT_PAD), jnp.float32).at[:, :_OUT].set(w3)
    b3_p = jnp.zeros((1, _OUT_PAD), jnp.float32).at[0, :_OUT].set(b3)
    return (w1, b1.reshape(1, _H1), w2, b2.reshape(1, _H2), w3_p, b3_p)


def small_model_forward(x, padded_params):
    """x: (batch, 784) f32 -> (batch, 10) f32, single fused pallas_call."""
    w1, b1, w2, b2, w3, b3 = padded_params
    B = x.shape[0]

    # Only the tiny activation tensor is (maybe) padded per call.
    tm = min(_round_up(B, 8), 256)          # batch tile; 1 grid step for small batches
    Bp = _round_up(B, tm)
    x_p = x if Bp == B else jnp.zeros((Bp, _IN), x.dtype).at[:B].set(x)

    grid = (Bp // tm,)

    out_p = pl.pallas_call(
        _mlp_kernel,
        out_shape=jax.ShapeDtypeStruct((Bp, _OUT_PAD), jnp.float32),
        grid_spec=pltpu.PrefetchScalarGridSpec(
            num_scalar_prefetch=0,
            grid=grid,
            in_specs=[
                pl.BlockSpec((tm, _IN), lambda i: (i, 0)),        # batch tile of x
                pl.BlockSpec((_IN, _H1), lambda i: (0, 0)),       # w1 resident
                pl.BlockSpec((1, _H1), lambda i: (0, 0)),         # b1 resident
                pl.BlockSpec((_H1, _H2), lambda i: (0, 0)),       # w2 resident
                pl.BlockSpec((1, _H2), lambda i: (0, 0)),         # b2 resident
                pl.BlockSpec((_H2, _OUT_PAD), lambda i: (0, 0)),  # w3 resident (padded)
                pl.BlockSpec((1, _OUT_PAD), lambda i: (0, 0)),    # b3 resident (padded)
            ],
            out_specs=pl.BlockSpec((tm, _OUT_PAD), lambda i: (i, 0)),
        ),
        compiler_params=pltpu.CompilerParams(
            dimension_semantics=("parallel",),  # batch axis shards across TCs on v7x
        ),
    )(x_p, w1, b1, w2, b2, w3, b3)

    return out_p[:B, :_OUT]


if __name__ == "__main__":
    key = jax.random.PRNGKey(0)
    k_x, k_p = jax.random.split(key)

    batch = 2
    x = jax.random.normal(k_x, (batch, _IN), jnp.float32)

    params = init_params(k_p)            # exact (unpadded) parameters
    padded_params = pad_params(params)   # packed once, outside the jitted forward

    fwd = jax.jit(small_model_forward)
    y = fwd(x, padded_params)
    jax.block_until_ready(y)

    # pure-JAX reference of the same math (unpadded params)
    ref = x
    for li, (w, b) in enumerate(params):
        ref = ref @ w + b
        if li < 2:
            ref = jnp.maximum(ref, 0.0)

    assert y.shape == (batch, _OUT)
    assert jnp.allclose(y, ref, atol=2e-4, rtol=2e-4)

    print("KERNEL_OK")
</pallas_src>

<mosaic_0001>
module attributes {stable_mosaic.version = 11 : i64} {
  func.func @_mlp_kernel(%arg0: i32, %arg1: memref<8x784xf32, #tpu.memory_space<vmem>>, %arg2: memref<784x256xf32, #tpu.memory_space<vmem>>, %arg3: memref<1x256xf32, #tpu.memory_space<vmem>>, %arg4: memref<256x128xf32, #tpu.memory_space<vmem>>, %arg5: memref<1x128xf32, #tpu.memory_space<vmem>>, %arg6: memref<128x128xf32, #tpu.memory_space<vmem>>, %arg7: memref<1x128xf32, #tpu.memory_space<vmem>>, %arg8: memref<8x128xf32, #tpu.memory_space<vmem>>) attributes {dimension_semantics = [#tpu.dimension_semantics<parallel>], iteration_bounds = array<i64: 1>, scalar_prefetch = 0 : i64, scratch_operands = 0 : i64, tpu.core_type = #tpu.core_type<tc>, window_params = [{transform_indices = @transform_0, window_bounds = array<i64: 8, 784>}, {pipeline_mode = #tpu.pipeline_mode<synchronous>, transform_indices = @transform_1, window_bounds = array<i64: 784, 256>}, {pipeline_mode = #tpu.pipeline_mode<synchronous>, transform_indices = @transform_2, window_bounds = array<i64: 1, 256>}, {pipeline_mode = #tpu.pipeline_mode<synchronous>, transform_indices = @transform_3, window_bounds = array<i64: 256, 128>}, {pipeline_mode = #tpu.pipeline_mode<synchronous>, transform_indices = @transform_4, window_bounds = array<i64: 1, 128>}, {pipeline_mode = #tpu.pipeline_mode<synchronous>, transform_indices = @transform_5, window_bounds = array<i64: 128, 128>}, {pipeline_mode = #tpu.pipeline_mode<synchronous>, transform_indices = @transform_6, window_bounds = array<i64: 1, 128>}, {transform_indices = @transform_7, window_bounds = array<i64: 8, 128>}]} {
    %c0 = arith.constant 0 : index
    %c0_0 = arith.constant 0 : index
    %0 = vector.load %arg1[%c0, %c0_0] : memref<8x784xf32, #tpu.memory_space<vmem>>, vector<8x784xf32>
    %c0_1 = arith.constant 0 : index
    %c0_2 = arith.constant 0 : index
    %1 = vector.load %arg2[%c0_1, %c0_2] : memref<784x256xf32, #tpu.memory_space<vmem>>, vector<784x256xf32>
    %cst = arith.constant dense<0.000000e+00> : vector<8x256xf32>
    %2 = tpu.matmul %0, %1, %cst {dimension_numbers = #tpu.dot_dimension_numbers<[1], [0], [0], [1], [0, 0, 1, 1], [], []>} : vector<8x784xf32>, vector<784x256xf32>, vector<8x256xf32> -> vector<8x256xf32>
    %c0_3 = arith.constant 0 : index
    %c0_4 = arith.constant 0 : index
    %3 = vector.load %arg3[%c0_3, %c0_4] : memref<1x256xf32, #tpu.memory_space<vmem>>, vector<1x256xf32>
    %4 = vector.broadcast %3 : vector<1x256xf32> to vector<8x256xf32>
    %5 = arith.addf %2, %4 : vector<8x256xf32>
    %cst_5 = arith.constant 0.000000e+00 : f32
    %6 = vector.broadcast %cst_5 : f32 to vector<8x256xf32>
    %7 = arith.maximumf %5, %6 : vector<8x256xf32>
    %c0_6 = arith.constant 0 : index
    %c0_7 = arith.constant 0 : index
    %8 = vector.load %arg4[%c0_6, %c0_7] : memref<256x128xf32, #tpu.memory_space<vmem>>, vector<256x128xf32>
    %cst_8 = arith.constant dense<0.000000e+00> : vector<8x128xf32>
    %9 = tpu.matmul %7, %8, %cst_8 {dimension_numbers = #tpu.dot_dimension_numbers<[1], [0], [0], [1], [0, 0, 1, 1], [], []>} : vector<8x256xf32>, vector<256x128xf32>, vector<8x128xf32> -> vector<8x128xf32>
    %c0_9 = arith.constant 0 : index
    %c0_10 = arith.constant 0 : index
    %10 = vector.load %arg5[%c0_9, %c0_10] : memref<1x128xf32, #tpu.memory_space<vmem>>, vector<1x128xf32>
    %11 = vector.broadcast %10 : vector<1x128xf32> to vector<8x128xf32>
    %12 = arith.addf %9, %11 : vector<8x128xf32>
    %cst_11 = arith.constant 0.000000e+00 : f32
    %13 = vector.broadcast %cst_11 : f32 to vector<8x128xf32>
    %14 = arith.maximumf %12, %13 : vector<8x128xf32>
    %c0_12 = arith.constant 0 : index
    %c0_13 = arith.constant 0 : index
    %15 = vector.load %arg6[%c0_12, %c0_13] : memref<128x128xf32, #tpu.memory_space<vmem>>, vector<128x128xf32>
    %cst_14 = arith.constant dense<0.000000e+00> : vector<8x128xf32>
    %16 = tpu.matmul %14, %15, %cst_14 {dimension_numbers = #tpu.dot_dimension_numbers<[1], [0], [0], [1], [0, 0, 1, 1], [], []>} : vector<8x128xf32>, vector<128x128xf32>, vector<8x128xf32> -> vector<8x128xf32>
    %c0_15 = arith.constant 0 : index
    %c0_16 = arith.constant 0 : index
    %17 = vector.load %arg7[%c0_15, %c0_16] : memref<1x128xf32, #tpu.memory_space<vmem>>, vector<1x128xf32>
    %18 = vector.broadcast %17 : vector<1x128xf32> to vector<8x128xf32>
    %19 = arith.addf %16, %18 : vector<8x128xf32>
    %c0_17 = arith.constant 0 : index
    %c0_18 = arith.constant 0 : index
    %20 = vector.load %arg8[%c0_17, %c0_18] : memref<8x128xf32, #tpu.memory_space<vmem>>, vector<8x128xf32>
    tpu.vector_store %arg8[%c0_17, %c0_18], %19 {strides = array<i32>} : memref<8x128xf32, #tpu.memory_space<vmem>>, vector<8x128xf32>,
    return
  }
  func.func @transform_0(%arg0: i32) -> (i32, i32) {
    %c0_i32 = arith.constant 0 : i32
    %c0_i32_0 = arith.constant 0 : i32
    return %arg0, %c0_i32 : i32, i32
  }
  func.func @transform_1(%arg0: i32) -> (i32, i32) {
    %c0_i32 = arith.constant 0 : i32
    %c0_i32_0 = arith.constant 0 : i32
    %c0_i32_1 = arith.constant 0 : i32
    return %c0_i32, %c0_i32_0 : i32, i32
  }
  func.func @transform_2(%arg0: i32) -> (i32, i32) {
    %c0_i32 = arith.constant 0 : i32
    %c0_i32_0 = arith.constant 0 : i32
    %c0_i32_1 = arith.constant 0 : i32
    return %c0_i32, %c0_i32_0 : i32, i32
  }
  func.func @transform_3(%arg0: i32) -> (i32, i32) {
    %c0_i32 = arith.constant 0 : i32
    %c0_i32_0 = arith.constant 0 : i32
    %c0_i32_1 = arith.constant 0 : i32
    return %c0_i32, %c0_i32_0 : i32, i32
  }
  func.func @transform_4(%arg0: i32) -> (i32, i32) {
    %c0_i32 = arith.constant 0 : i32
    %c0_i32_0 = arith.constant 0 : i32
    %c0_i32_1 = arith.constant 0 : i32
    return %c0_i32, %c0_i32_0 : i32, i32
  }
  func.func @transform_5(%arg0: i32) -> (i32, i32) {
    %c0_i32 = arith.constant 0 : i32
    %c0_i32_0 = arith.constant 0 : i32
    %c0_i32_1 = arith.constant 0 : i32
    return %c0_i32, %c0_i32_0 : i32, i32
  }
  func.func @transform_6(%arg0: i32) -> (i32, i32) {
    %c0_i32 = arith.constant 0 : i32
    %c0_i32_0 = arith.constant 0 : i32
    %c0_i32_1 = arith.constant 0 : i32
    return %c0_i32, %c0_i32_0 : i32, i32
  }
  func.func @transform_7(%arg0: i32) -> (i32, i32) {
    %c0_i32 = arith.constant 0 : i32
    %c0_i32_0 = arith.constant 0 : i32
    return %arg0, %c0_i32 : i32, i32
  }
}

</mosaic_0001>

<llo_original>
// kernel: small_model_forward.1
$region0: #{small_model_forward.1}
  #allocation0 [shape = 'u32[]', space=smem, size = 0x4, offset = 0x4, fixed_abs, tag = 'smem constant byte address 0x4 - core index']
  #allocation1 [shape = 'u32[144,128]{1,0:T(1,128)}', space=vmem, size = 0x12000, scoped, tag = 'internal scratch']
  %s0 = inlined_call_operand.vmem [shape: f32[8,784], index: 0, kind: input, shape index: {}]
  %s1 = inlined_call_operand.hbm [shape: f32[784,256], index: 1, kind: input, shape index: {}]
  %s2 = inlined_call_operand.vmem [shape: f32[1,256], index: 2, kind: input, shape index: {}]
  %s3 = inlined_call_operand.hbm [shape: f32[256,128], index: 3, kind: input, shape index: {}]
  %s4 = inlined_call_operand.vmem [shape: f32[1,128], index: 4, kind: input, shape index: {}]
  %s5 = inlined_call_operand.hbm [shape: f32[128,128], index: 5, kind: input, shape index: {}]
  %s6 = inlined_call_operand.vmem [shape: f32[1,128], index: 6, kind: input, shape index: {}]
  %s7 = inlined_call_operand.vmem [shape: f32[8,128], index: 7, kind: output, shape index: {}]
  %s8 = sld [smem:[#allocation0]]
  $region50: #{small_model_forward.1} parent=0
    _
  %s10 = ssub.s32 1, %s8
  %s11 = scalar_select 0, %s10, %s8
  $region1: #{small_model_forward.1} parent=0
    #allocation2 [shape = 'u8[802816]{0}', space=vmem, size = 0xc4000, scoped, tag = 'input window, operand 1, single buffered']
    #allocation3 [shape = 's32[1]{0}', space=sflag, size = 0x4, scoped, tag = 'scoped memory for small_model_forward.1']
    #allocation4 [shape = 'u8[131072]{0}', space=vmem, size = 0x20000, scoped, tag = 'input window, operand 3, single buffered']
    #allocation5 [shape = 's32[1]{0}', space=sflag, size = 0x4, scoped, tag = 'scoped memory for small_model_forward.1']
    #allocation6 [shape = 'u8[65536]{0}', space=vmem, size = 0x10000, scoped, tag = 'input window, operand 5, single buffered']
    %12 = vsyncpa [#allocation3], 0
    %13 = vsyncpa [#allocation5], 0
    // Predicated region
    $region2: #{small_model_forward.1} parent=1 // pred_check
      _
    $region3: #{small_model_forward.1} parent=1 // pred_check_branch
      %15 = sbr.rel (0) target = $region5
    $region4: #{small_model_forward.1} parent=1 // pred_region
      _
    $region5: #{small_model_forward.1} parent=1 // pred_fallthru
      _
    // Predicated region
    $region6: #{small_model_forward.1} parent=1 // pred_check
      _
    $region7: #{small_model_forward.1} parent=1 // pred_check_branch
      %17 = sbr.rel (0) target = $region9
    $region8: #{small_model_forward.1} parent=1 // pred_region
      %s19 = ssub.s32 25088, 25088
      %20 = vsyncadd [#allocation3], %s19
      %s21 = sshll.u32 [#allocation2], 4
      %s22 = int_to_ptr.vmem [resolvable:$true] %s21
      %27 = dma.hbm_to_vmem [thread:$0]  %s1, 25088, %s22, [#allocation3], 256, 256, 16
    $region9: #{small_model_forward.1} parent=1 // pred_fallthru
      _
    // Predicated region
    $region10: #{small_model_forward.1} parent=1 // pred_check
      _
    $region11: #{small_model_forward.1} parent=1 // pred_check_branch
      %29 = sbr.rel (0) target = $region13
    $region12: #{small_model_forward.1} parent=1 // pred_region
      _
    $region13: #{small_model_forward.1} parent=1 // pred_fallthru
      _
    // Predicated region
    $region14: #{small_model_forward.1} parent=1 // pred_check
      _
    $region15: #{small_model_forward.1} parent=1 // pred_check_branch
      %31 = sbr.rel (0) target = $region17
    $region16: #{small_model_forward.1} parent=1 // pred_region
      %s33 = ssub.s32 4096, 4096
      %34 = vsyncadd [#allocation5], %s33
      %s35 = sshll.u32 [#allocation4], 4
      %s36 = int_to_ptr.vmem [resolvable:$true] %s35
      %41 = dma.hbm_to_vmem [thread:$0]  %s3, 4096, %s36, [#allocation5], 128, 128, 8
    $region17: #{small_model_forward.1} parent=1 // pred_fallthru
      _
    // Predicated region
    $region18: #{small_model_forward.1} parent=1 // pred_check
      _
    $region19: #{small_model_forward.1} parent=1 // pred_check_branch
      %43 = sbr.rel (0) target = $region21
    $region20: #{small_model_forward.1} parent=1 // pred_region
      _
    $region21: #{small_model_forward.1} parent=1 // pred_fallthru
      _
    // Predicated region
    $region22: #{small_model_forward.1} parent=1 // pred_check
      _
    $region23: #{small_model_forward.1} parent=1 // pred_check_branch
      %45 = sbr.rel (0) target = $region25
    $region24: #{small_model_forward.1} parent=1 // pred_region
      %s47 = ssub.s32 2048, 2048
      %48 = vsyncadd [#allocation5], %s47
      %s49 = sshll.u32 [#allocation6], 4
      %s50 = int_to_ptr.vmem [resolvable:$true] %s49
      %55 = dma.hbm_to_vmem [thread:$0]  %s5, 2048, %s50, [#allocation5], 128, 128, 8
    $region25: #{small_model_forward.1} parent=1 // pred_fallthru
      _
    // Predicated region
    $region26: #{small_model_forward.1} parent=1 // pred_check
      _
    $region27: #{small_model_forward.1} parent=1 // pred_check_branch
      %57 = sbr.rel (0) target = $region29
    $region28: #{small_model_forward.1} parent=1 // pred_region
      _
    $region29: #{small_model_forward.1} parent=1 // pred_fallthru
      _
    // Predicated region
    $region30: #{small_model_forward.1} parent=1 // pred_check
      _
    $region31: #{small_model_forward.1} parent=1 // pred_check_branch
      %59 = sbr.rel (0) target = $region33
    $region32: #{small_model_forward.1} parent=1 // pred_region
      %60 = dma.done [#allocation3], 25088
    $region33: #{small_model_forward.1} parent=1 // pred_fallthru
      _
    // Predicated region
    $region34: #{small_model_forward.1} parent=1 // pred_check
      _
    $region35: #{small_model_forward.1} parent=1 // pred_check_branch
      %62 = sbr.rel (0) target = $region37
    $region36: #{small_model_forward.1} parent=1 // pred_region
      %63 = dma.done [#allocation5], 4096
    $region37: #{small_model_forward.1} parent=1 // pred_fallthru
      _
    // Predicated region
    $region38: #{small_model_forward.1} parent=1 // pred_check
      _
    $region39: #{small_model_forward.1} parent=1 // pred_check_branch
      %65 = sbr.rel (0) target = $region41
    $region40: #{small_model_forward.1} parent=1 // pred_region
      %66 = dma.done [#allocation5], 2048
    $region41: #{small_model_forward.1} parent=1 // pred_fallthru
      _
    %v67 = vld [vmem:[%s0] sm:$0xff]
    %v68 = vld [vmem:[%s0 + $0x8] sm:$0xff]
    %v69 = vld [vmem:[%s0 + $0x10] sm:$0xff]
    %v70 = vld [vmem:[%s0 + $0x18] sm:$0xff]
    %v71 = vld [vmem:[%s0 + $0x20] sm:$0xff]
    %v72 = vld [vmem:[%s0 + $0x28] sm:$0xff]
    %v73 = vld [vmem:[%s0 + $0x30] sm:$0xff]
    %v74 = vld [vmem:[#allocation2] sm:$0xff]
    %v75 = vld [vmem:[#allocation2 + $0x8] sm:$0xff]
    %v76 = vld [vmem:[#allocation2 + $0x10] sm:$0xff]
    %v77 = vld [vmem:[#allocation2 + $0x18] sm:$0xff]
    %v78 = vld [vmem:[#allocation2 + $0x20] sm:$0xff]
    %v79 = vld [vmem:[#allocation2 + $0x28] sm:$0xff]
    %v80 = vld [vmem:[#allocation2 + $0x30] sm:$0xff]
    %v81 = vld [vmem:[#allocation2 + $0x38] sm:$0xff]
    %v82 = vld [vmem:[#allocation2 + $0x40] sm:$0xff]
    %v83 = vld [vmem:[#allocation2 + $0x48] sm:$0xff]
    %v84 = vld [vmem:[#allocation2 + $0x50] sm:$0xff]
    %v85 = vld [vmem:[#allocation2 + $0x58] sm:$0xff]
    %v86 = vld [vmem:[#allocation2 + $0x60] sm:$0xff]
    %v87 = vld [vmem:[#allocation2 + $0x68] sm:$0xff]
    %v88 = vld [vmem:[#allocation2 + $0x70] sm:$0xff]
    %v89 = vld [vmem:[#allocation2 + $0x78] sm:$0xff]
    %v90 = vld [vmem:[#allocation2 + $0x80] sm:$0xff]
    %v91 = vld [vmem:[#allocation2 + $0x88] sm:$0xff]
    %v92 = vld [vmem:[#allocation2 + $0x90] sm:$0xff]
    %v93 = vld [vmem:[#allocation2 + $0x98] sm:$0xff]
    %v94 = vld [vmem:[#allocation2 + $0xa0] sm:$0xff]
    %v95 = vld [vmem:[#allocation2 + $0xa8] sm:$0xff]
    %v96 = vld [vmem:[#allocation2 + $0xb0] sm:$0xff]
    %v97 = vld [vmem:[#allocation2 + $0xb8] sm:$0xff]
    %v98 = vld [vmem:[#allocation2 + $0xc0] sm:$0xff]
    %v99 = vld [vmem:[#allocation2 + $0xc8] sm:$0xff]
    %v100 = vld [vmem:[#allocation2 + $0xd0] sm:$0xff]
    %v101 = vld [vmem:[#allocation2 + $0xd8] sm:$0xff]
    %v102 = vld [vmem:[#allocation2 + $0xe0] sm:$0xff]
    %v103 = vld [vmem:[#allocation2 + $0xe8] sm:$0xff]
    %v104 = vld [vmem:[#allocation2 + $0xf0] sm:$0xff]
    %v105 = vld [vmem:[#allocation2 + $0xf8] sm:$0xff]
    %v106 = vld [vmem:[#allocation2 + $0x100] sm:$0xff]
    %v107 = vld [vmem:[#allocation2 + $0x108] sm:$0xff]
    %v108 = vld [vmem:[#allocation2 + $0x110] sm:$0xff]
    %v109 = vld [vmem:[#allocation2 + $0x118] sm:$0xff]
    %v110 = vld [vmem:[#allocation2 + $0x120] sm:$0xff]
    %v111 = vld [vmem:[#allocation2 + $0x128] sm:$0xff]
    %v112 = vld [vmem:[#allocation2 + $0x130] sm:$0xff]
    %v113 = vld [vmem:[#allocation2 + $0x138] sm:$0xff]
    %v114 = vld [vmem:[#allocation2 + $0x140] sm:$0xff]
    %v115 = vld [vmem:[#allocation2 + $0x148] sm:$0xff]
    %v116 = vld [vmem:[#allocation2 + $0x150] sm:$0xff]
    %v117 = vld [vmem:[#allocation2 + $0x158] sm:$0xff]
    %v118 = vld [vmem:[#allocation2 + $0x160] sm:$0xff]
    %v119 = vld [vmem:[#allocation2 + $0x168] sm:$0xff]
    %v120 = vld [vmem:[#allocation2 + $0x170] sm:$0xff]
    %v121 = vld [vmem:[#allocation2 + $0x178] sm:$0xff]
    %v122 = vld [vmem:[#allocation2 + $0x180] sm:$0xff]
    %v123 = vld [vmem:[#allocation2 + $0x188] sm:$0xff]
    %v124 = vld [vmem:[#allocation2 + $0x190] sm:$0xff]
    %v125 = vld [vmem:[#allocation2 + $0x198] sm:$0xff]
    %v126 = vld [vmem:[#allocation2 + $0x1a0] sm:$0xff]
    %v127 = vld [vmem:[#allocation2 + $0x1a8] sm:$0xff]
    %v128 = vld [vmem:[#allocation2 + $0x1b0] sm:$0xff]
    %v129 = vld [vmem:[#allocation2 + $0x1b8] sm:$0xff]
    %v130 = vld [vmem:[#allocation2 + $0x1c0] sm:$0xff]
    %v131 = vld [vmem:[#allocation2 + $0x1c8] sm:$0xff]
    %v132 = vld [vmem:[#allocation2 + $0x1d0] sm:$0xff]
    %v133 = vld [vmem:[#allocation2 + $0x1d8] sm:$0xff]
    %v134 = vld [vmem:[#allocation2 + $0x1e0] sm:$0xff]
    %v135 = vld [vmem:[#allocation2 + $0x1e8] sm:$0xff]
    %v136 = vld [vmem:[#allocation2 + $0x1f0] sm:$0xff]
    %v137 = vld [vmem:[#allocation2 + $0x1f8] sm:$0xff]
    %v138 = vld [vmem:[#allocation2 + $0x200] sm:$0xff]
    %v139 = vld [vmem:[#allocation2 + $0x208] sm:$0xff]
    %v140 = vld [vmem:[#allocation2 + $0x210] sm:$0xff]
    %v141 = vld [vmem:[#allocation2 + $0x218] sm:$0xff]
    %v142 = vld [vmem:[#allocation2 + $0x220] sm:$0xff]
    %v143 = vld [vmem:[#allocation2 + $0x228] sm:$0xff]
    %v144 = vld [vmem:[#allocation2 + $0x230] sm:$0xff]
    %v145 = vld [vmem:[#allocation2 + $0x238] sm:$0xff]
    %v146 = vld [vmem:[#allocation2 + $0x240] sm:$0xff]
    %v147 = vld [vmem:[#allocation2 + $0x248] sm:$0xff]
    %v148 = vld [vmem:[#allocation2 + $0x250] sm:$0xff]
    %v149 = vld [vmem:[#allocation2 + $0x258] sm:$0xff]
    %v150 = vld [vmem:[#allocation2 + $0x260] sm:$0xff]
    %v151 = vld [vmem:[#allocation2 + $0x268] sm:$0xff]
    %v152 = vld [vmem:[#allocation2 + $0x270] sm:$0xff]
    %v153 = vld [vmem:[#allocation2 + $0x278] sm:$0xff]
    %v154 = vld [vmem:[#allocation2 + $0x280] sm:$0xff]
    %v155 = vld [vmem:[#allocation2 + $0x288] sm:$0xff]
    %v156 = vld [vmem:[#allocation2 + $0x290] sm:$0xff]
    %v157 = vld [vmem:[#allocation2 + $0x298] sm:$0xff]
    %v158 = vld [vmem:[#allocation2 + $0x2a0] sm:$0xff]
    %v159 = vld [vmem:[#allocation2 + $0x2a8] sm:$0xff]
    %v160 = vld [vmem:[#allocation2 + $0x2b0] sm:$0xff]
    %v161 = vld [vmem:[#allocation2 + $0x2b8] sm:$0xff]
    %v162 = vld [vmem:[#allocation2 + $0x2c0] sm:$0xff]
    %v163 = vld [vmem:[#allocation2 + $0x2c8] sm:$0xff]
    %v164 = vld [vmem:[#allocation2 + $0x2d0] sm:$0xff]
    %v165 = vld [vmem:[#allocation2 + $0x2d8] sm:$0xff]
    %v166 = vld [vmem:[#allocation2 + $0x2e0] sm:$0xff]
    %v167 = vld [vmem:[#allocation2 + $0x2e8] sm:$0xff]
    %v168 = vld [vmem:[#allocation2 + $0x2f0] sm:$0xff]
    %v169 = vld [vmem:[#allocation2 + $0x2f8] sm:$0xff]
    %v170 = vld [vmem:[#allocation2 + $0x300] sm:$0xff]
    %v171 = vld [vmem:[#allocation2 + $0x308] sm:$0xff]
    %v172 = vld [vmem:[#allocation2 + $0x310] sm:$0xff]
    %v173 = vld [vmem:[#allocation2 + $0x318] sm:$0xff]
    %v174 = vld [vmem:[#allocation2 + $0x320] sm:$0xff]
    %v175 = vld [vmem:[#allocation2 + $0x328] sm:$0xff]
    %v176 = vld [vmem:[#allocation2 + $0x330] sm:$0xff]
    %v177 = vld [vmem:[#allocation2 + $0x338] sm:$0xff]
    %v178 = vld [vmem:[#allocation2 + $0x340] sm:$0xff]
    %v179 = vld [vmem:[#allocation2 + $0x348] sm:$0xff]
    %v180 = vld [vmem:[#allocation2 + $0x350] sm:$0xff]
    %v181 = vld [vmem:[#allocation2 + $0x358] sm:$0xff]
    %v182 = vld [vmem:[#allocation2 + $0x360] sm:$0xff]
    %v183 = vld [vmem:[#allocation2 + $0x368] sm:$0xff]
    %v184 = vld [vmem:[#allocation2 + $0x370] sm:$0xff]
    %v185 = vld [vmem:[#allocation2 + $0x378] sm:$0xff]
    %v186 = vld [vmem:[#allocation2 + $0x380] sm:$0xff]
    %v187 = vld [vmem:[#allocation2 + $0x388] sm:$0xff]
    %v188 = vld [vmem:[#allocation2 + $0x390] sm:$0xff]
    %v189 = vld [vmem:[#allocation2 + $0x398] sm:$0xff]
    %v190 = vld [vmem:[#allocation2 + $0x3a0] sm:$0xff]
    %v191 = vld [vmem:[#allocation2 + $0x3a8] sm:$0xff]
    %v192 = vld [vmem:[#allocation2 + $0x3b0] sm:$0xff]
    %v193 = vld [vmem:[#allocation2 + $0x3b8] sm:$0xff]
    %v194 = vld [vmem:[#allocation2 + $0x3c0] sm:$0xff]
    %v195 = vld [vmem:[#allocation2 + $0x3c8] sm:$0xff]
    %v196 = vld [vmem:[#allocation2 + $0x3d0] sm:$0xff]
    %v197 = vld [vmem:[#allocation2 + $0x3d8] sm:$0xff]
    %v198 = vld [vmem:[#allocation2 + $0x3e0] sm:$0xff]
    %v199 = vld [vmem:[#allocation2 + $0x3e8] sm:$0xff]
    %v200 = vld [vmem:[#allocation2 + $0x3f0] sm:$0xff]
    %v201 = vld [vmem:[#allocation2 + $0x3f8] sm:$0xff]
    %v202 = vld [vmem:[#allocation2 + $0x400] sm:$0xff]
    %v203 = vld [vmem:[#allocation2 + $0x408] sm:$0xff]
    %v204 = vld [vmem:[#allocation2 + $0x410] sm:$0xff]
    %v205 = vld [vmem:[#allocation2 + $0x418] sm:$0xff]
    %v206 = vld [vmem:[#allocation2 + $0x420] sm:$0xff]
    %v207 = vld [vmem:[#allocation2 + $0x428] sm:$0xff]
    %v208 = vld [vmem:[#allocation2 + $0x430] sm:$0xff]
    %v209 = vld [vmem:[#allocation2 + $0x438] sm:$0xff]
    %v210 = vld [vmem:[#allocation2 + $0x440] sm:$0xff]
    %v211 = vld [vmem:[#allocation2 + $0x448] sm:$0xff]
    %v212 = vld [vmem:[#allocation2 + $0x450] sm:$0xff]
    %v213 = vld [vmem:[#allocation2 + $0x458] sm:$0xff]
    %v214 = vld [vmem:[#allocation2 + $0x460] sm:$0xff]
    %v215 = vld [vmem:[#allocation2 + $0x468] sm:$0xff]
    %v216 = vld [vmem:[#allocation2 + $0x470] sm:$0xff]
    %v217 = vld [vmem:[#allocation2 + $0x478] sm:$0xff]
    %v218 = vld [vmem:[#allocation2 + $0x480] sm:$0xff]
    %v219 = vld [vmem:[#allocation2 + $0x488] sm:$0xff]
    %v220 = vld [vmem:[#allocation2 + $0x490] sm:$0xff]
    %v221 = vld [vmem:[#allocation2 + $0x498] sm:$0xff]
    %v222 = vld [vmem:[#allocation2 + $0x4a0] sm:$0xff]
    %v223 = vld [vmem:[#allocation2 + $0x4a8] sm:$0xff]
    %v224 = vld [vmem:[#allocation2 + $0x4b0] sm:$0xff]
    %v225 = vld [vmem:[#allocation2 + $0x4b8] sm:$0xff]
    %v226 = vld [vmem:[#allocation2 + $0x4c0] sm:$0xff]
    %v227 = vld [vmem:[#allocation2 + $0x4c8] sm:$0xff]
    %v228 = vld [vmem:[#allocation2 + $0x4d0] sm:$0xff]
    %v229 = vld [vmem:[#allocation2 + $0x4d8] sm:$0xff]
    %v230 = vld [vmem:[#allocation2 + $0x4e0] sm:$0xff]
    %v231 = vld [vmem:[#allocation2 + $0x4e8] sm:$0xff]
    %v232 = vld [vmem:[#allocation2 + $0x4f0] sm:$0xff]
    %v233 = vld [vmem:[#allocation2 + $0x4f8] sm:$0xff]
    %v234 = vld [vmem:[#allocation2 + $0x500] sm:$0xff]
    %v235 = vld [vmem:[#allocation2 + $0x508] sm:$0xff]
    %v236 = vld [vmem:[#allocation2 + $0x510] sm:$0xff]
    %v237 = vld [vmem:[#allocation2 + $0x518] sm:$0xff]
    %v238 = vld [vmem:[#allocation2 + $0x520] sm:$0xff]
    %v239 = vld [vmem:[#allocation2 + $0x528] sm:$0xff]
    %v240 = vld [vmem:[#allocation2 + $0x530] sm:$0xff]
    %v241 = vld [vmem:[#allocation2 + $0x538] sm:$0xff]
    %v242 = vld [vmem:[#allocation2 + $0x540] sm:$0xff]
    %v243 = vld [vmem:[#allocation2 + $0x548] sm:$0xff]
    %v244 = vld [vmem:[#allocation2 + $0x550] sm:$0xff]
    %v245 = vld [vmem:[#allocation2 + $0x558] sm:$0xff]
    %v246 = vld [vmem:[#allocation2 + $0x560] sm:$0xff]
    %v247 = vld [vmem:[#allocation2 + $0x568] sm:$0xff]
    %v248 = vld [vmem:[#allocation2 + $0x570] sm:$0xff]
    %v249 = vld [vmem:[#allocation2 + $0x578] sm:$0xff]
    %v250 = vld [vmem:[#allocation2 + $0x580] sm:$0xff]
    %v251 = vld [vmem:[#allocation2 + $0x588] sm:$0xff]
    %v252 = vld [vmem:[#allocation2 + $0x590] sm:$0xff]
    %v253 = vld [vmem:[#allocation2 + $0x598] sm:$0xff]
    %v254 = vld [vmem:[#allocation2 + $0x5a0] sm:$0xff]
    %v255 = vld [vmem:[#allocation2 + $0x5a8] sm:$0xff]
    %v256 = vld [vmem:[#allocation2 + $0x5b0] sm:$0xff]
    %v257 = vld [vmem:[#allocation2 + $0x5b8] sm:$0xff]
    %v258 = vld [vmem:[#allocation2 + $0x5c0] sm:$0xff]
    %v259 = vld [vmem:[#allocation2 + $0x5c8] sm:$0xff]
    %v260 = vld [vmem:[#allocation2 + $0x5d0] sm:$0xff]
    %v261 = vld [vmem:[#allocation2 + $0x5d8] sm:$0xff]
    %v262 = vld [vmem:[#allocation2 + $0x5e0] sm:$0xff]
    %v263 = vld [vmem:[#allocation2 + $0x5e8] sm:$0xff]
    %v264 = vld [vmem:[#allocation2 + $0x5f0] sm:$0xff]
    %v265 = vld [vmem:[#allocation2 + $0x5f8] sm:$0xff]
    %v266 = vld [vmem:[#allocation2 + $0x600] sm:$0xff]
    %v267 = vld [vmem:[#allocation2 + $0x608] sm:$0xff]
    %v268 = vld [vmem:[#allocation2 + $0x610] sm:$0xff]
    %v269 = vld [vmem:[#allocation2 + $0x618] sm:$0xff]
    %v270 = vld [vmem:[%s2] sm:$0x3]
    %v272 = vlaneseq
    %v273 = vshrl.u32 %v272, 7
    %v274 = vsub.s32 0, %v273
    %v275 = vrot.slane %v270, %v274
    %v276 = vlaneseq
    %v277 = vshrl.u32 %v276, 7
    %v278 = vsub.s32 1, %v277
    %v279 = vrot.slane %v270, %v278
    %vm282 = vcmask 130048
    %v284 = vsel %vm282, %v73, 0
    %286 = vmatprep.subr.mxu0 %v75
    %287 = vmatpush1.msra.mxu0 %v74
    %288 = vmatprep.subr.mxu0 %v77
    %289 = vmatpush1.msra.mxu0 %v76
    %290 = vmatprep.subr.mxu0 %v79
    %291 = vmatpush1.msra.mxu0 %v78
    %292 = vmatprep.subr.mxu0 %v81
    %293 = vmatpush1.msra.mxu0 %v80
    %294 = vmatprep.subr.mxu0 %v83
    %295 = vmatpush1.msra.mxu0 %v82
    %296 = vmatprep.subr.mxu0 %v85
    %297 = vmatpush1.msra.mxu0 %v84
    %298 = vmatprep.subr.mxu0 %v87
    %299 = vmatpush1.msra.mxu0 %v86
    %300 = vmatprep.subr.mxu0 %v89
    %301 = vmatpush1.msra.mxu0 %v88
    %302 = vmatprep.subr.mxu0 %v91
    %303 = vmatpush1.msra.mxu0 %v90
    %304 = vmatprep.subr.mxu0 %v93
    %305 = vmatpush1.msra.mxu0 %v92
    %306 = vmatprep.subr.mxu0 %v95
    %307 = vmatpush1.msra.mxu0 %v94
    %308 = vmatprep.subr.mxu0 %v97
    %309 = vmatpush1.msra.mxu0 %v96
    %310 = vmatprep.subr.mxu0 %v99
    %311 = vmatpush1.msra.mxu0 %v98
    %312 = vmatprep.subr.mxu0 %v101
    %313 = vmatpush1.msra.mxu0 %v100
    %314 = vmatprep.subr.mxu0 %v103
    %315 = vmatpush1.msra.mxu0 %v102
    %316 = vmatprep.subr.mxu0 %v105
    %317 = vmatpush1.msra.mxu0 %v104
    %318 = vmatprep.subr.mxu0 %v107
    %319 = vmatpush1.msra.mxu0 %v106
    %320 = vmatprep.subr.mxu0 %v109
    %321 = vmatpush1.msra.mxu0 %v108
    %322 = vmatprep.subr.mxu0 %v111
    %323 = vmatpush1.msra.mxu0 %v110
    %324 = vmatprep.subr.mxu0 %v113
    %325 = vmatpush1.msra.mxu0 %v112
    %326 = vmatprep.subr.mxu0 %v115
    %327 = vmatpush1.msra.mxu0 %v114
    %328 = vmatprep.subr.mxu0 %v117
    %329 = vmatpush1.msra.mxu0 %v116
    %330 = vmatprep.subr.mxu0 %v119
    %331 = vmatpush1.msra.mxu0 %v118
    %332 = vmatprep.subr.mxu0 %v121
    %333 = vmatpush1.msra.mxu0 %v120
    %334 = vmatprep.subr.mxu0 %v123
    %335 = vmatpush1.msra.mxu0 %v122
    %336 = vmatprep.subr.mxu0 %v125
    %337 = vmatpush1.msra.mxu0 %v124
    %338 = vmatprep.subr.mxu0 %v127
    %339 = vmatpush1.msra.mxu0 %v126
    %340 = vmatprep.subr.mxu0 %v129
    %341 = vmatpush1.msra.mxu0 %v128
    %342 = vmatprep.subr.mxu0 %v131
    %343 = vmatpush1.msra.mxu0 %v130
    %344 = vmatprep.subr.mxu0 %v133
    %345 = vmatpush1.msra.mxu0 %v132
    %346 = vmatprep.subr.mxu0 %v135
    %347 = vmatpush1.msra.mxu0 %v134
    %348 = vmatprep.subr.mxu0 %v137
    %349 = vmatpush1.msra.mxu0 %v136
    %350 = vmatprep.mubr.f32.mxu0 %v68
    %351 = vmatmul.mubr.f32.gmra.mrb[0].mxu0 %v67
    %v352 = vpop.f32.mrb[0].mxu0
    %v353 = vadd.f32 %v275, %v352
    %v354 = vpop.f32.mrb[0].mxu0
    %v355 = vadd.f32 %v279, %v354
    %356 = vdwg.mxu0
    %357 = vmatprep.subr.mxu0 %v139
    %358 = vmatpush1.msra.mxu0 %v138
    %359 = vmatprep.subr.mxu0 %v141
    %360 = vmatpush1.msra.mxu0 %v140
    %361 = vmatprep.subr.mxu0 %v143
    %362 = vmatpush1.msra.mxu0 %v142
    %363 = vmatprep.subr.mxu0 %v145
    %364 = vmatpush1.msra.mxu0 %v144
    %365 = vmatprep.subr.mxu0 %v147
    %366 = vmatpush1.msra.mxu0 %v146
    %367 = vmatprep.subr.mxu0 %v149
    %368 = vmatpush1.msra.mxu0 %v148
    %369 = vmatprep.subr.mxu0 %v151
    %370 = vmatpush1.msra.mxu0 %v150
    %371 = vmatprep.subr.mxu0 %v153
    %372 = vmatpush1.msra.mxu0 %v152
    %373 = vmatprep.subr.mxu0 %v155
    %374 = vmatpush1.msra.mxu0 %v154
    %375 = vmatprep.subr.mxu0 %v157
    %376 = vmatpush1.msra.mxu0 %v156
    %377 = vmatprep.subr.mxu0 %v159
    %378 = vmatpush1.msra.mxu0 %v158
    %379 = vmatprep.subr.mxu0 %v161
    %380 = vmatpush1.msra.mxu0 %v160
    %381 = vmatprep.subr.mxu0 %v163
    %382 = vmatpush1.msra.mxu0 %v162
    %383 = vmatprep.subr.mxu0 %v165
    %384 = vmatpush1.msra.mxu0 %v164
    %385 = vmatprep.subr.mxu0 %v167
    %386 = vmatpush1.msra.mxu0 %v166
    %387 = vmatprep.subr.mxu0 %v169
    %388 = vmatpush1.msra.mxu0 %v168
    %389 = vmatprep.subr.mxu0 %v171
    %390 = vmatpush1.msra.mxu0 %v170
    %391 = vmatprep.subr.mxu0 %v173
    %392 = vmatpush1.msra.mxu0 %v172
    %393 = vmatprep.subr.mxu0 %v175
    %394 = vmatpush1.msra.mxu0 %v174
    %395 = vmatprep.subr.mxu0 %v177
    %396 = vmatpush1.msra.mxu0 %v176
    %397 = vmatprep.subr.mxu0 %v179
    %398 = vmatpush1.msra.mxu0 %v178
    %399 = vmatprep.subr.mxu0 %v181
    %400 = vmatpush1.msra.mxu0 %v180
    %401 = vmatprep.subr.mxu0 %v183
    %402 = vmatpush1.msra.mxu0 %v182
    %403 = vmatprep.subr.mxu0 %v185
    %404 = vmatpush1.msra.mxu0 %v184
    %405 = vmatprep.subr.mxu0 %v187
    %406 = vmatpush1.msra.mxu0 %v186
    %407 = vmatprep.subr.mxu0 %v189
    %408 = vmatpush1.msra.mxu0 %v188
    %409 = vmatprep.subr.mxu0 %v191
    %410 = vmatpush1.msra.mxu0 %v190
    %411 = vmatprep.subr.mxu0 %v193
    %412 = vmatpush1.msra.mxu0 %v192
    %413 = vmatprep.subr.mxu0 %v195
    %414 = vmatpush1.msra.mxu0 %v194
    %415 = vmatprep.subr.mxu0 %v197
    %416 = vmatpush1.msra.mxu0 %v196
    %417 = vmatprep.subr.mxu0 %v199
    %418 = vmatpush1.msra.mxu0 %v198
    %419 = vmatprep.subr.mxu0 %v201
    %420 = vmatpush1.msra.mxu0 %v200
    %421 = vmatprep.mubr.f32.mxu0 %v70
    %422 = vmatmul.mubr.f32.gmra.mrb[0].mxu0 %v69
    %v423 = vpop.f32.mrb[0].mxu0
    %v424 = vadd.f32 %v353, %v423
    %v425 = vpop.f32.mrb[0].mxu0
    %v426 = vadd.f32 %v355, %v425
    %427 = vdwg.mxu0
    %428 = vmatprep.subr.mxu0 %v203
    %429 = vmatpush1.msra.mxu0 %v202
    %430 = vmatprep.subr.mxu0 %v205
    %431 = vmatpush1.msra.mxu0 %v204
    %432 = vmatprep.subr.mxu0 %v207
    %433 = vmatpush1.msra.mxu0 %v206
    %434 = vmatprep.subr.mxu0 %v209
    %435 = vmatpush1.msra.mxu0 %v208
    %436 = vmatprep.subr.mxu0 %v211
    %437 = vmatpush1.msra.mxu0 %v210
    %438 = vmatprep.subr.mxu0 %v213
    %439 = vmatpush1.msra.mxu0 %v212
    %440 = vmatprep.subr.mxu0 %v215
    %441 = vmatpush1.msra.mxu0 %v214
    %442 = vmatprep.subr.mxu0 %v217
    %443 = vmatpush1.msra.mxu0 %v216
    %444 = vmatprep.subr.mxu0 %v219
    %445 = vmatpush1.msra.mxu0 %v218
    %446 = vmatprep.subr.mxu0 %v221
    %447 = vmatpush1.msra.mxu0 %v220
    %448 = vmatprep.subr.mxu0 %v223
    %449 = vmatpush1.msra.mxu0 %v222
    %450 = vmatprep.subr.mxu0 %v225
    %451 = vmatpush1.msra.mxu0 %v224
    %452 = vmatprep.subr.mxu0 %v227
    %453 = vmatpush1.msra.mxu0 %v226
    %454 = vmatprep.subr.mxu0 %v229
    %455 = vmatpush1.msra.mxu0 %v228
    %456 = vmatprep.subr.mxu0 %v231
    %457 = vmatpush1.msra.mxu0 %v230
    %458 = vmatprep.subr.mxu0 %v233
    %459 = vmatpush1.msra.mxu0 %v232
    %460 = vmatprep.subr.mxu0 %v235
    %461 = vmatpush1.msra.mxu0 %v234
    %462 = vmatprep.subr.mxu0 %v237
    %463 = vmatpush1.msra.mxu0 %v236
    %464 = vmatprep.subr.mxu0 %v239
    %465 = vmatpush1.msra.mxu0 %v238
    %466 = vmatprep.subr.mxu0 %v241
    %467 = vmatpush1.msra.mxu0 %v240
    %468 = vmatprep.subr.mxu0 %v243
    %469 = vmatpush1.msra.mxu0 %v242
    %470 = vmatprep.subr.mxu0 %v245
    %471 = vmatpush1.msra.mxu0 %v244
    %472 = vmatprep.subr.mxu0 %v247
    %473 = vmatpush1.msra.mxu0 %v246
    %474 = vmatprep.subr.mxu0 %v249
    %475 = vmatpush1.msra.mxu0 %v248
    %476 = vmatprep.subr.mxu0 %v251
    %477 = vmatpush1.msra.mxu0 %v250
    %478 = vmatprep.subr.mxu0 %v253
    %479 = vmatpush1.msra.mxu0 %v252
    %480 = vmatprep.subr.mxu0 %v255
    %481 = vmatpush1.msra.mxu0 %v254
    %482 = vmatprep.subr.mxu0 %v257
    %483 = vmatpush1.msra.mxu0 %v256
    %484 = vmatprep.subr.mxu0 %v259
    %485 = vmatpush1.msra.mxu0 %v258
    %486 = vmatprep.subr.mxu0 %v261
    %487 = vmatpush1.msra.mxu0 %v260
    %488 = vmatprep.subr.mxu0 %v263
    %489 = vmatpush1.msra.mxu0 %v262
    %490 = vmatprep.subr.mxu0 %v265
    %491 = vmatpush1.msra.mxu0 %v264
    %492 = vmatprep.mubr.f32.mxu0 %v72
    %493 = vmatmul.mubr.f32.gmra.mrb[0].mxu0 %v71
    %v494 = vpop.f32.mrb[0].mxu0
    %v495 = vadd.f32 %v424, %v494
    %v496 = vpop.f32.mrb[0].mxu0
    %v497 = vadd.f32 %v426, %v496
    %498 = vdwg.mxu0
    %499 = vmatprep.subr.mxu0 %v267
    %500 = vmatpush1.msra.mxu0 %v266
    %501 = vmatprep.subr.mxu0 %v269
    %502 = vmatpush1.msra.mxu0 %v268
    %503 = vmatprep.subr.mxu0 0.0
    %504 = vmatpush1.msra.mxu0 0.0
    %505 = vmatprep.subr.mxu0 0.0
    %506 = vmatpush1.msra.mxu0 0.0
    %507 = vmatprep.subr.mxu0 0.0
    %508 = vmatpush1.msra.mxu0 0.0
    %509 = vmatprep.subr.mxu0 0.0
    %510 = vmatpush1.msra.mxu0 0.0
    %511 = vmatprep.subr.mxu0 0.0
    %512 = vmatpush1.msra.mxu0 0.0
    %513 = vmatprep.subr.mxu0 0.0
    %514 = vmatpush1.msra.mxu0 0.0
    %515 = vmatprep.subr.mxu0 0.0
    %516 = vmatpush1.msra.mxu0 0.0
    %517 = vmatprep.subr.mxu0 0.0
    %518 = vmatpush1.msra.mxu0 0.0
    %519 = vmatprep.subr.mxu0 0.0
    %520 = vmatpush1.msra.mxu0 0.0
    %521 = vmatprep.subr.mxu0 0.0
    %522 = vmatpush1.msra.mxu0 0.0
    %523 = vmatprep.subr.mxu0 0.0
    %524 = vmatpush1.msra.mxu0 0.0
    %525 = vmatprep.subr.mxu0 0.0
    %526 = vmatpush1.msra.mxu0 0.0
    %527 = vmatprep.subr.mxu0 0.0
    %528 = vmatpush1.msra.mxu0 0.0
    %529 = vmatprep.subr.mxu0 0.0
    %530 = vmatpush1.msra.mxu0 0.0
    %531 = vmatprep.subr.mxu0 0.0
    %532 = vmatpush1.msra.mxu0 0.0
    %533 = vmatprep.subr.mxu0 0.0
    %534 = vmatpush1.msra.mxu0 0.0
    %535 = vmatprep.subr.mxu0 0.0
    %536 = vmatpush1.msra.mxu0 0.0
    %537 = vmatprep.subr.mxu0 0.0
    %538 = vmatpush1.msra.mxu0 0.0
    %539 = vmatprep.subr.mxu0 0.0
    %540 = vmatpush1.msra.mxu0 0.0
    %541 = vmatprep.subr.mxu0 0.0
    %542 = vmatpush1.msra.mxu0 0.0
    %543 = vmatprep.subr.mxu0 0.0
    %544 = vmatpush1.msra.mxu0 0.0
    %545 = vmatprep.subr.mxu0 0.0
    %546 = vmatpush1.msra.mxu0 0.0
    %547 = vmatprep.subr.mxu0 0.0
    %548 = vmatpush1.msra.mxu0 0.0
    %549 = vmatprep.subr.mxu0 0.0
    %550 = vmatpush1.msra.mxu0 0.0
    %551 = vmatprep.subr.mxu0 0.0
    %552 = vmatpush1.msra.mxu0 0.0
    %553 = vmatprep.subr.mxu0 0.0
    %554 = vmatpush1.msra.mxu0 0.0
    %555 = vmatprep.subr.mxu0 0.0
    %556 = vmatpush1.msra.mxu0 0.0
    %557 = vmatprep.subr.mxu0 0.0
    %558 = vmatpush1.msra.mxu0 0.0
    %559 = vmatprep.subr.mxu0 0.0
    %560 = vmatpush1.msra.mxu0 0.0
    %561 = vmatprep.subr.mxu0 0.0
    %562 = vmatpush1.msra.mxu0 0.0
    %563 = vmatprep.mubr.f32.mxu0 0.0
    %564 = vmatmul.mubr.f32.gmra.mrb[0].mxu0 %v284
    %v565 = vpop.f32.mrb[0].mxu0
    %v566 = vadd.f32 %v495, %v565
    %v567 = vpop.f32.mrb[0].mxu0
    %v568 = vadd.f32 %v497, %v567
    %569 = vdwg.mxu0
    %v570 = vmax.f32 %v566, 0.0
    %v571 = vmax.f32 %v568, 0.0
    %v572 = vld [vmem:[#allocation4] sm:$0xff]
    %v573 = vld [vmem:[#allocation4 + $0x8] sm:$0xff]
    %v574 = vld [vmem:[#allocation4 + $0x10] sm:$0xff]
    %v575 = vld [vmem:[#allocation4 + $0x18] sm:$0xff]
    %v576 = vld [vmem:[#allocation4 + $0x20] sm:$0xff]
    %v577 = vld [vmem:[#allocation4 + $0x28] sm:$0xff]
    %v578 = vld [vmem:[#allocation4 + $0x30] sm:$0xff]
    %v579 = vld [vmem:[#allocation4 + $0x38] sm:$0xff]
    %v580 = vld [vmem:[#allocation4 + $0x40] sm:$0xff]
    %v581 = vld [vmem:[#allocation4 + $0x48] sm:$0xff]
    %v582 = vld [vmem:[#allocation4 + $0x50] sm:$0xff]
    %v583 = vld [vmem:[#allocation4 + $0x58] sm:$0xff]
    %v584 = vld [vmem:[#allocation4 + $0x60] sm:$0xff]
    %v585 = vld [vmem:[#allocation4 + $0x68] sm:$0xff]
    %v586 = vld [vmem:[#allocation4 + $0x70] sm:$0xff]
    %v587 = vld [vmem:[#allocation4 + $0x78] sm:$0xff]
    %v588 = vld [vmem:[#allocation4 + $0x80] sm:$0xff]
    %v589 = vld [vmem:[#allocation4 + $0x88] sm:$0xff]
    %v590 = vld [vmem:[#allocation4 + $0x90] sm:$0xff]
    %v591 = vld [vmem:[#allocation4 + $0x98] sm:$0xff]
    %v592 = vld [vmem:[#allocation4 + $0xa0] sm:$0xff]
    %v593 = vld [vmem:[#allocation4 + $0xa8] sm:$0xff]
    %v594 = vld [vmem:[#allocation4 + $0xb0] sm:$0xff]
    %v595 = vld [vmem:[#allocation4 + $0xb8] sm:$0xff]
    %v596 = vld [vmem:[#allocation4 + $0xc0] sm:$0xff]
    %v597 = vld [vmem:[#allocation4 + $0xc8] sm:$0xff]
    %v598 = vld [vmem:[#allocation4 + $0xd0] sm:$0xff]
    %v599 = vld [vmem:[#allocation4 + $0xd8] sm:$0xff]
    %v600 = vld [vmem:[#allocation4 + $0xe0] sm:$0xff]
    %v601 = vld [vmem:[#allocation4 + $0xe8] sm:$0xff]
    %v602 = vld [vmem:[#allocation4 + $0xf0] sm:$0xff]
    %v603 = vld [vmem:[#allocation4 + $0xf8] sm:$0xff]
    %v604 = vld [vmem:[%s4] sm:$0x1]
    %v606 = vlaneseq
    %v607 = vshrl.u32 %v606, 7
    %v608 = vsub.s32 0, %v607
    %v609 = vrot.slane %v604, %v608
    %611 = vmatprep.subr.mxu0 0.0
    %612 = vmatpush1.msra.mxu0 %v572
    %613 = vmatprep.subr.mxu0 0.0
    %614 = vmatpush1.msra.mxu0 %v573
    %615 = vmatprep.subr.mxu0 0.0
    %616 = vmatpush1.msra.mxu0 %v574
    %617 = vmatprep.subr.mxu0 0.0
    %618 = vmatpush1.msra.mxu0 %v575
    %619 = vmatprep.subr.mxu0 0.0
    %620 = vmatpush1.msra.mxu0 %v576
    %621 = vmatprep.subr.mxu0 0.0
    %622 = vmatpush1.msra.mxu0 %v577
    %623 = vmatprep.subr.mxu0 0.0
    %624 = vmatpush1.msra.mxu0 %v578
    %625 = vmatprep.subr.mxu0 0.0
    %626 = vmatpush1.msra.mxu0 %v579
    %627 = vmatprep.subr.mxu0 0.0
    %628 = vmatpush1.msra.mxu0 %v580
    %629 = vmatprep.subr.mxu0 0.0
    %630 = vmatpush1.msra.mxu0 %v581
    %631 = vmatprep.subr.mxu0 0.0
    %632 = vmatpush1.msra.mxu0 %v582
    %633 = vmatprep.subr.mxu0 0.0
    %634 = vmatpush1.msra.mxu0 %v583
    %635 = vmatprep.subr.mxu0 0.0
    %636 = vmatpush1.msra.mxu0 %v584
    %637 = vmatprep.subr.mxu0 0.0
    %638 = vmatpush1.msra.mxu0 %v585
    %639 = vmatprep.subr.mxu0 0.0
    %640 = vmatpush1.msra.mxu0 %v586
    %641 = vmatprep.subr.mxu0 0.0
    %642 = vmatpush1.msra.mxu0 %v587
    %643 = vmatprep.subr.mxu0 0.0
    %644 = vmatpush1.msra.mxu0 %v588
    %645 = vmatprep.subr.mxu0 0.0
    %646 = vmatpush1.msra.mxu0 %v589
    %647 = vmatprep.subr.mxu0 0.0
    %648 = vmatpush1.msra.mxu0 %v590
    %649 = vmatprep.subr.mxu0 0.0
    %650 = vmatpush1.msra.mxu0 %v591
    %651 = vmatprep.subr.mxu0 0.0
    %652 = vmatpush1.msra.mxu0 %v592
    %653 = vmatprep.subr.mxu0 0.0
    %654 = vmatpush1.msra.mxu0 %v593
    %655 = vmatprep.subr.mxu0 0.0
    %656 = vmatpush1.msra.mxu0 %v594
    %657 = vmatprep.subr.mxu0 0.0
    %658 = vmatpush1.msra.mxu0 %v595
    %659 = vmatprep.subr.mxu0 0.0
    %660 = vmatpush1.msra.mxu0 %v596
    %661 = vmatprep.subr.mxu0 0.0
    %662 = vmatpush1.msra.mxu0 %v597
    %663 = vmatprep.subr.mxu0 0.0
    %664 = vmatpush1.msra.mxu0 %v598
    %665 = vmatprep.subr.mxu0 0.0
    %666 = vmatpush1.msra.mxu0 %v599
    %667 = vmatprep.subr.mxu0 0.0
    %668 = vmatpush1.msra.mxu0 %v600
    %669 = vmatprep.subr.mxu0 0.0
    %670 = vmatpush1.msra.mxu0 %v601
    %671 = vmatprep.subr.mxu0 0.0
    %672 = vmatpush1.msra.mxu0 %v602
    %673 = vmatprep.subr.mxu0 0.0
    %674 = vmatpush1.msra.mxu0 %v603
    %675 = vmatprep.mubr.f32.mxu0 %v571
    %676 = vmatmul.mubr.f32.gmra.mrb[0].mxu0 %v570
    %v677 = vpop.f32.mrb[0].mxu0
    %v678 = vadd.f32 %v609, %v677
    %v679 = vpop.f32.mrb[0].mxu0
    %680 = vdwg.mxu0
    %v681 = vmax.f32 %v678, 0.0
    %v682 = vld [vmem:[#allocation6] sm:$0xff]
    %v683 = vld [vmem:[#allocation6 + $0x8] sm:$0xff]
    %v684 = vld [vmem:[#allocation6 + $0x10] sm:$0xff]
    %v685 = vld [vmem:[#allocation6 + $0x18] sm:$0xff]
    %v686 = vld [vmem:[#allocation6 + $0x20] sm:$0xff]
    %v687 = vld [vmem:[#allocation6 + $0x28] sm:$0xff]
    %v688 = vld [vmem:[#allocation6 + $0x30] sm:$0xff]
    %v689 = vld [vmem:[#allocation6 + $0x38] sm:$0xff]
    %v690 = vld [vmem:[#allocation6 + $0x40] sm:$0xff]
    %v691 = vld [vmem:[#allocation6 + $0x48] sm:$0xff]
    %v692 = vld [vmem:[#allocation6 + $0x50] sm:$0xff]
    %v693 = vld [vmem:[#allocation6 + $0x58] sm:$0xff]
    %v694 = vld [vmem:[#allocation6 + $0x60] sm:$0xff]
    %v695 = vld [vmem:[#allocation6 + $0x68] sm:$0xff]
    %v696 = vld [vmem:[#allocation6 + $0x70] sm:$0xff]
    %v697 = vld [vmem:[#allocation6 + $0x78] sm:$0xff]
    %v698 = vld [vmem:[%s6] sm:$0x1]
    %v700 = vlaneseq
    %v701 = vshrl.u32 %v700, 7
    %v702 = vsub.s32 0, %v701
    %v703 = vrot.slane %v698, %v702
    %705 = vmatprep.subr.mxu0 0.0
    %706 = vmatpush1.msra.mxu0 %v682
    %707 = vmatprep.subr.mxu0 0.0
    %708 = vmatpush1.msra.mxu0 %v683
    %709 = vmatprep.subr.mxu0 0.0
    %710 = vmatpush1.msra.mxu0 %v684
    %711 = vmatprep.subr.mxu0 0.0
    %712 = vmatpush1.msra.mxu0 %v685
    %713 = vmatprep.subr.mxu0 0.0
    %714 = vmatpush1.msra.mxu0 %v686
    %715 = vmatprep.subr.mxu0 0.0
    %716 = vmatpush1.msra.mxu0 %v687
    %717 = vmatprep.subr.mxu0 0.0
    %718 = vmatpush1.msra.mxu0 %v688
    %719 = vmatprep.subr.mxu0 0.0
    %720 = vmatpush1.msra.mxu0 %v689
    %721 = vmatprep.subr.mxu0 0.0
    %722 = vmatpush1.msra.mxu0 %v690
    %723 = vmatprep.subr.mxu0 0.0
    %724 = vmatpush1.msra.mxu0 %v691
    %725 = vmatprep.subr.mxu0 0.0
    %726 = vmatpush1.msra.mxu0 %v692
    %727 = vmatprep.subr.mxu0 0.0
    %728 = vmatpush1.msra.mxu0 %v693
    %729 = vmatprep.subr.mxu0 0.0
    %730 = vmatpush1.msra.mxu0 %v694
    %731 = vmatprep.subr.mxu0 0.0
    %732 = vmatpush1.msra.mxu0 %v695
    %733 = vmatprep.subr.mxu0 0.0
    %734 = vmatpush1.msra.mxu0 %v696
    %735 = vmatprep.subr.mxu0 0.0
    %736 = vmatpush1.msra.mxu0 %v697
    %737 = vmatprep.subr.mxu0 0.0
    %738 = vmatpush1.msra.mxu0 0.0
    %739 = vmatprep.subr.mxu0 0.0
    %740 = vmatpush1.msra.mxu0 0.0
    %741 = vmatprep.subr.mxu0 0.0
    %742 = vmatpush1.msra.mxu0 0.0
    %743 = vmatprep.subr.mxu0 0.0
    %744 = vmatpush1.msra.mxu0 0.0
    %745 = vmatprep.subr.mxu0 0.0
    %746 = vmatpush1.msra.mxu0 0.0
    %747 = vmatprep.subr.mxu0 0.0
    %748 = vmatpush1.msra.mxu0 0.0
    %749 = vmatprep.subr.mxu0 0.0
    %750 = vmatpush1.msra.mxu0 0.0
    %751 = vmatprep.subr.mxu0 0.0
    %752 = vmatpush1.msra.mxu0 0.0
    %753 = vmatprep.subr.mxu0 0.0
    %754 = vmatpush1.msra.mxu0 0.0
    %755 = vmatprep.subr.mxu0 0.0
    %756 = vmatpush1.msra.mxu0 0.0
    %757 = vmatprep.subr.mxu0 0.0
    %758 = vmatpush1.msra.mxu0 0.0
    %759 = vmatprep.subr.mxu0 0.0
    %760 = vmatpush1.msra.mxu0 0.0
    %761 = vmatprep.subr.mxu0 0.0
    %762 = vmatpush1.msra.mxu0 0.0
    %763 = vmatprep.subr.mxu0 0.0
    %764 = vmatpush1.msra.mxu0 0.0
    %765 = vmatprep.subr.mxu0 0.0
    %766 = vmatpush1.msra.mxu0 0.0
    %767 = vmatprep.subr.mxu0 0.0
    %768 = vmatpush1.msra.mxu0 0.0
    %769 = vmatprep.mubr.f32.mxu0 0.0
    %770 = vmatmul.mubr.f32.gmra.mrb[0].mxu0 %v681
    %v771 = vpop.f32.mrb[0].mxu0
    %v772 = vadd.f32 %v703, %v771
    %v773 = vpop.f32.mrb[0].mxu0
    %774 = vdwg.mxu0
    %775 = vst [vmem:[%s7] sm:$0xff] %v772
    // Predicated region
    $region42: #{small_model_forward.1} parent=1 // pred_check
      _
    $region43: #{small_model_forward.1} parent=1 // pred_check_branch
      %777 = sbr.rel (0) target = $region45
    $region44: #{small_model_forward.1} parent=1 // pred_region
      _
    $region45: #{small_model_forward.1} parent=1 // pred_fallthru
      _
    // Predicated region
    $region46: #{small_model_forward.1} parent=1 // pred_check
      _
    $region47: #{small_model_forward.1} parent=1 // pred_check_branch
      %779 = sbr.rel (0) target = $region49
    $region48: #{small_model_forward.1} parent=1 // pred_region
      _
    $region49: #{small_model_forward.1} parent=1 // pred_fallthru
      _
    %780 = vsyncpa [#allocation3], 1
    %781 = vsyncpa [#allocation5], 1

</llo_original>
